<compile_context>
chip_gen: v7x
topology: tpu7x:2x2x1
jax: 0.10.0
libtpu: 0.0.40
codegen_flags: <defaults>
</compile_context>

<pallas_src>
import jax
import jax.numpy as jnp
from jax.experimental import pallas as pl
from jax.experimental.pallas import tpu as pltpu


def _round_up(n, m):
    return -(-n // m) * m


def _quadratic_kernel(xr_ref, xc_ref, a_ref, o_ref, acc_ref):
    # xr_ref: (TM, 1) row-chunk of x        xc_ref: (1, D) full x (resident)
    # a_ref : (TM, D) row-block of A        o_ref : (1, 1, 1) per-core partial
    # acc_ref (scratch): (8, D) f32 sublane-grouped partial of x @ A
    k = pl.program_id(1)

    @pl.when(k == 0)
    def _init():
        acc_ref[...] = jnp.zeros_like(acc_ref)

    # Pure VPU multiply + VALU adds over aligned 8-sublane groups (no MXU —
    # a 1-row matmul would waste it — and no per-step cross-sublane XLU work).
    tm = a_ref.shape[0]
    part = a_ref[0:8, :] * xr_ref[0:8, :]
    for g in range(1, tm // 8):
        lo = g * 8
        part = part + a_ref[lo:lo + 8, :] * xr_ref[lo:lo + 8, :]
    acc_ref[...] += part

    @pl.when(k == pl.num_programs(1) - 1)
    def _finalize():
        # Single deferred cross-sublane + cross-lane reduce: (x @ A) @ x.
        quad = jnp.sum(acc_ref[...] * xc_ref[...])
        o_ref[...] = (0.5 * quad).reshape(1, 1, 1).astype(o_ref.dtype)


def _vmem_capacity_bytes():
    try:
        return int(pltpu.get_tpu_info().vmem_capacity_bytes)
    except Exception:
        return 64 << 20  # conservative fallback: v7x has the smallest VMEM


def _pick_row_tile(D, a_pair_budget_bytes):
    """Largest row tile TM (multiple of 8) such that two double-buffered
    (TM, Dp) f32 A tiles fit the per-core budget; never larger than
    round_up(D, 8)."""
    Dp = max(128, _round_up(D, 128))
    budget_rows = max(8, a_pair_budget_bytes // (2 * Dp * 4))
    tm = 8
    for cand in (1024, 768, 512, 384, 256, 128, 64, 32, 16, 8):
        if cand <= budget_rows:
            tm = cand
            break
    return max(8, min(tm, _round_up(D, 8)))


def quadratic(x, A, row_tile=None, force_kernel=False):
    """Compute 0.5 * x @ A @ x with a single Pallas TPU kernel.

    x: (D,) float32, A: (D, D) float32  ->  scalar float32 (0-d array)
    """
    D = x.shape[0]
    assert A.shape == (D, D)
    x = x.astype(jnp.float32)
    A = A.astype(jnp.float32)

    # Tiny problems: pallas_call fixed cost dwarfs the 4*D^2-byte stream.
    if D <= 256 and not force_kernel:
        return 0.5 * (x @ (A @ x))

    vmem_cap = _vmem_capacity_bytes()
    usable = int(vmem_cap * 0.85)             # ~54 MiB (v7x), ~109 MiB (v5e/v6e)
    a_pair_budget = max(4 << 20, usable - (6 << 20))

    if row_tile is None:
        TM = _pick_row_tile(D, a_pair_budget)
    else:
        TM = max(8, _round_up(int(row_tile), 8))

    # cdiv grid, split into two halves (one per v7x TensorCore).  Zero-pad the
    # rows of A / x so any padded blocks contribute exactly zero.
    n_blocks = -(-D // TM)
    nb_half = -(-n_blocks // 2)
    rows_padded = 2 * nb_half * TM

    x_col = jnp.zeros((rows_padded, 1), jnp.float32).at[:D, 0].set(x)
    x_row = x.reshape(1, D)
    if rows_padded == D:
        A_pad = A
    else:
        A_pad = jnp.zeros((rows_padded, D), jnp.float32).at[:D, :].set(A)

    # VMEM budget (padded to (8, 128) tiles), capped below physical capacity.
    Dp = max(128, _round_up(D, 128))
    vmem_bytes = (
        2 * TM * Dp * 4          # double-buffered A tiles
        + 2 * TM * 128 * 4       # double-buffered (TM, 1) x chunks (lane-padded)
        + 2 * 8 * Dp * 4         # resident (1, D) x row
        + 8 * Dp * 4             # (8, D) accumulator scratch
        + (4 << 20)              # headroom (out tile, internal scratch/temps)
    )
    vmem_bytes = int(min(max(vmem_bytes, 8 << 20), usable))

    cost = pl.CostEstimate(
        flops=2 * D * D + 2 * D,
        transcendentals=0,
        bytes_accessed=4 * D * D + 8 * D + 8,
    )

    partials = pl.pallas_call(
        _quadratic_kernel,
        out_shape=jax.ShapeDtypeStruct((2, 1, 1), jnp.float32),
        grid_spec=pltpu.PrefetchScalarGridSpec(
            num_scalar_prefetch=0,
            grid=(2, nb_half),                                   # (core-half, reduction)
            in_specs=[
                pl.BlockSpec((TM, 1), lambda c, k: (c * nb_half + k, 0)),  # x chunk
                pl.BlockSpec((1, D), lambda c, k: (0, 0)),                 # full x (resident)
                pl.BlockSpec((TM, D), lambda c, k: (c * nb_half + k, 0)),  # A row-block
            ],
            out_specs=pl.BlockSpec((1, 1, 1), lambda c, k: (c, 0, 0)),
            scratch_shapes=[pltpu.VMEM((8, D), jnp.float32)],
        ),
        compiler_params=pltpu.CompilerParams(
            dimension_semantics=("parallel", "arbitrary"),
            vmem_limit_bytes=vmem_bytes,
        ),
        cost_estimate=cost,
    )(x_col, x_row, A_pad)

    # Each core already applied the 0.5 factor to its own partial.
    return partials.sum()


if __name__ == "__main__":
    key = jax.random.PRNGKey(0)
    kx, ka = jax.random.split(key)

    # Module-spec shape: input_dim = 32 (torch.randn parameter A, vector x).
    D = 32
    A = jax.random.normal(ka, (D, D), dtype=jnp.float32)
    x = jax.random.normal(kx, (D,), dtype=jnp.float32)

    # Exercise the Pallas kernel at the module's shape (force past the XLA
    # small-D fast path).
    y = quadratic(x, A, force_kernel=True)
    jax.block_until_ready(y)
    y_ref = 0.5 * (x @ A @ x)
    assert jnp.allclose(y, y_ref, rtol=1e-5, atol=1e-5), (y, y_ref)

    # Small-D fast path (pure XLA) must agree too.
    y_fast = quadratic(x, A)
    jax.block_until_ready(y_fast)
    assert jnp.allclose(y_fast, y_ref, rtol=1e-5, atol=1e-5), (y_fast, y_ref)

    # Non-divisible D: exercises cdiv tiling, zero-padded last block, the
    # multi-step accumulator, and the two-half "parallel" grid split.
    D2 = 200
    k2x, k2a = jax.random.split(jax.random.PRNGKey(1))
    A2 = jax.random.normal(k2a, (D2, D2), dtype=jnp.float32)
    x2 = jax.random.normal(k2x, (D2,), dtype=jnp.float32)
    y2 = quadratic(x2, A2, row_tile=32, force_kernel=True)   # grid=(2, 4), 7 real + 1 pad block
    jax.block_until_ready(y2)
    y2_ref = 0.5 * (x2 @ A2 @ x2)
    assert jnp.allclose(y2, y2_ref, rtol=1e-4, atol=1e-3), (y2, y2_ref)

    print("KERNEL_OK")
</pallas_src>

<mosaic_0001>
module attributes {stable_mosaic.version = 11 : i64} {
  func.func @_quadratic_kernel(%arg0: i32, %arg1: i32, %arg2: memref<32x1xf32, #tpu.memory_space<vmem>>, %arg3: memref<1x32xf32, #tpu.memory_space<vmem>>, %arg4: memref<32x32xf32, #tpu.memory_space<vmem>>, %arg5: memref<1x1x1xf32, #tpu.memory_space<vmem>>, %arg6: memref<8x32xf32, #tpu.memory_space<vmem>>) attributes {dimension_semantics = [#tpu.dimension_semantics<parallel>, #tpu.dimension_semantics<arbitrary>], iteration_bounds = array<i64: 2, 1>, scalar_prefetch = 0 : i64, scratch_operands = 1 : i64, tpu.core_type = #tpu.core_type<tc>, window_params = [{transform_indices = @transform_0, window_bounds = array<i64: 32, 1>}, {pipeline_mode = #tpu.pipeline_mode<synchronous>, transform_indices = @transform_1, window_bounds = array<i64: 1, 32>}, {transform_indices = @transform_2, window_bounds = array<i64: 32, 32>}, {transform_indices = @transform_3, window_bounds = array<i64: 1, 1, 1>}]} {
    %c0_i32 = arith.constant 0 : i32
    %0 = arith.cmpi eq, %arg1, %c0_i32 : i32
    %1 = arith.extui %0 : i1 to i32
    %c0_i32_0 = arith.constant 0 : i32
    %2 = arith.cmpi ne, %1, %c0_i32_0 : i32
    scf.if %2 {
      %cst = arith.constant 0.000000e+00 : f32
      %28 = vector.broadcast %cst : f32 to vector<8x32xf32>
      %c0_19 = arith.constant 0 : index
      %c0_20 = arith.constant 0 : index
      %29 = vector.load %arg6[%c0_19, %c0_20] : memref<8x32xf32, #tpu.memory_space<vmem>>, vector<8x32xf32>
      tpu.vector_store %arg6[%c0_19, %c0_20], %28 {strides = array<i32>} : memref<8x32xf32, #tpu.memory_space<vmem>>, vector<8x32xf32>,
    } else {
    }
    %c0 = arith.constant 0 : index
    %c0_1 = arith.constant 0 : index
    %3 = vector.load %arg4[%c0, %c0_1] : memref<32x32xf32, #tpu.memory_space<vmem>>, vector<8x32xf32>
    %c0_2 = arith.constant 0 : index
    %c0_3 = arith.constant 0 : index
    %4 = vector.load %arg2[%c0_2, %c0_3] : memref<32x1xf32, #tpu.memory_space<vmem>>, vector<8x1xf32>
    %5 = vector.broadcast %4 : vector<8x1xf32> to vector<8x32xf32>
    %6 = arith.mulf %3, %5 : vector<8x32xf32>
    %c8 = arith.constant 8 : index
    %c0_4 = arith.constant 0 : index
    %7 = vector.load %arg4[%c8, %c0_4] : memref<32x32xf32, #tpu.memory_space<vmem>>, vector<8x32xf32>
    %c8_5 = arith.constant 8 : index
    %c0_6 = arith.constant 0 : index
    %8 = vector.load %arg2[%c8_5, %c0_6] : memref<32x1xf32, #tpu.memory_space<vmem>>, vector<8x1xf32>
    %9 = vector.broadcast %8 : vector<8x1xf32> to vector<8x32xf32>
    %10 = arith.mulf %7, %9 : vector<8x32xf32>
    %11 = arith.addf %6, %10 : vector<8x32xf32>
    %c16 = arith.constant 16 : index
    %c0_7 = arith.constant 0 : index
    %12 = vector.load %arg4[%c16, %c0_7] : memref<32x32xf32, #tpu.memory_space<vmem>>, vector<8x32xf32>
    %c16_8 = arith.constant 16 : index
    %c0_9 = arith.constant 0 : index
    %13 = vector.load %arg2[%c16_8, %c0_9] : memref<32x1xf32, #tpu.memory_space<vmem>>, vector<8x1xf32>
    %14 = vector.broadcast %13 : vector<8x1xf32> to vector<8x32xf32>
    %15 = arith.mulf %12, %14 : vector<8x32xf32>
    %16 = arith.addf %11, %15 : vector<8x32xf32>
    %c24 = arith.constant 24 : index
    %c0_10 = arith.constant 0 : index
    %17 = vector.load %arg4[%c24, %c0_10] : memref<32x32xf32, #tpu.memory_space<vmem>>, vector<8x32xf32>
    %c24_11 = arith.constant 24 : index
    %c0_12 = arith.constant 0 : index
    %18 = vector.load %arg2[%c24_11, %c0_12] : memref<32x1xf32, #tpu.memory_space<vmem>>, vector<8x1xf32>
    %19 = vector.broadcast %18 : vector<8x1xf32> to vector<8x32xf32>
    %20 = arith.mulf %17, %19 : vector<8x32xf32>
    %21 = arith.addf %16, %20 : vector<8x32xf32>
    %c0_13 = arith.constant 0 : index
    %c0_14 = arith.constant 0 : index
    %22 = vector.load %arg6[%c0_13, %c0_14] : memref<8x32xf32, #tpu.memory_space<vmem>>, vector<8x32xf32>
    %23 = arith.addf %22, %21 : vector<8x32xf32>
    %c0_15 = arith.constant 0 : index
    %c0_16 = arith.constant 0 : index
    %24 = vector.load %arg6[%c0_15, %c0_16] : memref<8x32xf32, #tpu.memory_space<vmem>>, vector<8x32xf32>
    tpu.vector_store %arg6[%c0_15, %c0_16], %23 {strides = array<i32>} : memref<8x32xf32, #tpu.memory_space<vmem>>, vector<8x32xf32>,
    %c0_i32_17 = arith.constant 0 : i32
    %25 = arith.cmpi eq, %arg1, %c0_i32_17 : i32
    %26 = arith.extui %25 : i1 to i32
    %c0_i32_18 = arith.constant 0 : i32
    %27 = arith.cmpi ne, %26, %c0_i32_18 : i32
    scf.if %27 {
      %c0_19 = arith.constant 0 : index
      %c0_20 = arith.constant 0 : index
      %28 = vector.load %arg6[%c0_19, %c0_20] : memref<8x32xf32, #tpu.memory_space<vmem>>, vector<8x32xf32>
      %c0_21 = arith.constant 0 : index
      %c0_22 = arith.constant 0 : index
      %29 = vector.load %arg3[%c0_21, %c0_22] : memref<1x32xf32, #tpu.memory_space<vmem>>, vector<1x32xf32>
      %30 = vector.broadcast %29 : vector<1x32xf32> to vector<8x32xf32>
      %31 = arith.mulf %28, %30 : vector<8x32xf32>
      %32 = vector.shape_cast %31 : vector<8x32xf32> to vector<1x8x32xf32>
      %cst = arith.constant dense<0.000000e+00> : vector<1xf32>
      %33 = vector.multi_reduction <add>, %32, %cst [1, 2] : vector<1x8x32xf32> to vector<1xf32>
      %34 = vector.shape_cast %33 : vector<1xf32> to vector<1x1x1xf32>
      %35 = vector.extract %34[0, 0, 0] : f32 from vector<1x1x1xf32>
      %cst_23 = arith.constant 5.000000e-01 : f32
      %36 = arith.mulf %cst_23, %35 : f32
      %37 = vector.broadcast %36 : f32 to vector<1x1x1xf32>
      %c0_24 = arith.constant 0 : index
      %c0_25 = arith.constant 0 : index
      %c0_26 = arith.constant 0 : index
      %38 = vector.load %arg5[%c0_24, %c0_25, %c0_26] : memref<1x1x1xf32, #tpu.memory_space<vmem>>, vector<1x1x1xf32>
      tpu.vector_store %arg5[%c0_24, %c0_25, %c0_26], %37 {strides = array<i32>} : memref<1x1x1xf32, #tpu.memory_space<vmem>>, vector<1x1x1xf32>,
    } else {
    }
    return
  }
  func.func @transform_0(%arg0: i32, %arg1: i32) -> (i32, i32) {
    %c1_i32 = arith.constant 1 : i32
    %0 = arith.muli %arg0, %c1_i32 : i32
    %1 = arith.addi %0, %arg1 : i32
    %c0_i32 = arith.constant 0 : i32
    %c0_i32_0 = arith.constant 0 : i32
    return %1, %c0_i32 : i32, i32
  }
  func.func @transform_1(%arg0: i32, %arg1: i32) -> (i32, i32) {
    %c0_i32 = arith.constant 0 : i32
    %c0_i32_0 = arith.constant 0 : i32
    %c0_i32_1 = arith.constant 0 : i32
    return %c0_i32, %c0_i32_0 : i32, i32
  }
  func.func @transform_2(%arg0: i32, %arg1: i32) -> (i32, i32) {
    %c1_i32 = arith.constant 1 : i32
    %0 = arith.muli %arg0, %c1_i32 : i32
    %1 = arith.addi %0, %arg1 : i32
    %c0_i32 = arith.constant 0 : i32
    %c0_i32_0 = arith.constant 0 : i32
    return %1, %c0_i32 : i32, i32
  }
  func.func @transform_3(%arg0: i32, %arg1: i32) -> (i32, i32, i32) {
    %c0_i32 = arith.constant 0 : i32
    %c0_i32_0 = arith.constant 0 : i32
    %c0_i32_1 = arith.constant 0 : i32
    return %arg0, %c0_i32, %c0_i32_0 : i32, i32, i32
  }
}

</mosaic_0001>

<llo_original>
// kernel: tpu_custom_call.1
$region0: #{tpu_custom_call.1}
  #allocation0 [shape = 'u32[]', space=smem, size = 0x4, offset = 0x4, fixed_abs, tag = 'smem constant byte address 0x4 - core index']
  #allocation1 [shape = 'u32[144,128]{1,0:T(1,128)}', space=vmem, size = 0x12000, scoped, tag = 'internal scratch']
  #allocation2 [shape = 'f32[8,32]{1,0:T(8,128)}', space=vmem, size = 0x1000, scoped, tag = 'scratch operand']
  %s0 = inlined_call_operand.vmem [shape: f32[64,1], index: 0, kind: input, shape index: {}]
  %s1 = inlined_call_operand.vmem [shape: f32[1,32], index: 1, kind: input, shape index: {}]
  %s2 = inlined_call_operand.vmem [shape: f32[64,32], index: 2, kind: input, shape index: {}]
  %s3 = inlined_call_operand.vmem [shape: f32[2,1,1], index: 3, kind: output, shape index: {}]
  %s4 = sld [smem:[#allocation0]]
  $region53: #{tpu_custom_call.1} parent=0
    _
  %s6 = ssub.s32 1, %s4
  %s7 = scalar_select 0, %s6, %s4
  loop: start=0, step=1, limit=4
  $region2: #{tpu_custom_call.1} parent=0 // loop_pre_header
    _
  $region3: #{tpu_custom_call.1} parent=0 // loop_header
    %s9 = sphi 0, %s13
    %p10 = scmp.ge.s32.totalorder %s9, 4
    %s16 = sphi 0, %s28
    %s17 = sphi 0, %s24
    %s18 = sphi 0, %s16
    %s19 = sphi 0, %s17
    %s20 = sphi 0, %s18
    %s21 = sphi 0, %s19
    %s33 = sphi 0, %s35
    %s36 = sphi 0, %s33
    %s37 = sphi 0, %s36
    %s53 = sphi 0, %s37
    %s57 = sphi 0, %s57
    %s59 = sphi 0, %s57
    %s60 = sphi 0, %s59
    %s74 = sphi 0, %s60
    %s82 = sphi 0, %s84
    %s85 = sphi 0, %s82
    %s86 = sphi 0, %s85
    %s102 = sphi 0, %s86
    %s108 = sphi 0, %s110
    %s111 = sphi 0, %s108
    %s112 = sphi 0, %s111
    %s128 = sphi 0, %s112
  $region4: #{tpu_custom_call.1} parent=0 // loop_header_branch
    %12 = sbr.rel (%p10) target = $region8
  $region5: #{tpu_custom_call.1} parent=0 // loop_body
    %s14 = ssub.s32 %s9, 1
    %s15 = ssub.s32 %s9, 2
    %s22 = sadd.s32 1, %s17
    %p23 = scmp.ge.s32.totalorder %s22, 1
    %s24 = scalar_select %p23, 0, %s22
    %s25 = sadd.s32 1, %s16
    %s26 = scalar_select %p23, %s25, %s16
    %p27 = scmp.ge.s32.totalorder %s26, 2
    %s28 = scalar_select %p27, 0, %s26
    %s29 = sadd.s32 %s16, %s17
    %s30 = sadd.s32 %s28, %s24
    %s31 = ssub.s32 %s29, %s30
    %p32 = scmp.eq.s32.totalorder %s31, 0
    %s34 = sadd.s32 %s33, 1
    %s35 = scalar_select %p32, %s33, %s34
    %p38 = pneg %p32
    %p39 = scmp.eq.s32.totalorder %s9, 1
    %p40 = por %p38, %p39
    %p41 = scmp.ne.s32.totalorder %s33, %s36
    %p42 = scmp.eq.s32.totalorder %s9, 0
    %p43 = por %p41, %p42
    %p44 = scmp.ne.s32.totalorder %s33, %s36
    %p45 = scmp.eq.s32.totalorder %s14, 1
    %p46 = por %p44, %p45
    %p47 = scmp.ne.s32.totalorder %s36, %s37
    %p48 = scmp.eq.s32.totalorder %s14, 0
    %p49 = por %p47, %p48
    %p50 = scmp.ne.s32.totalorder %s36, %s37
    %p51 = scmp.eq.s32.totalorder %s15, 1
    %p52 = por %p50, %p51
    %p54 = scmp.ne.s32.totalorder %s37, %s53
    %p55 = scmp.eq.s32.totalorder %s15, 0
    %p56 = por %p54, %p55
    %s58 = sadd.s32 %s57, 1
    %p61 = scmp.eq.s32.totalorder %s9, 1
    %p62 = scmp.ne.s32.totalorder %s57, %s59
    %p63 = scmp.eq.s32.totalorder %s9, 0
    %p64 = por %p62, %p63
    %p65 = scmp.ne.s32.totalorder %s57, %s59
    %p66 = scmp.eq.s32.totalorder %s14, 1
    %p67 = por %p65, %p66
    %p68 = scmp.ne.s32.totalorder %s59, %s60
    %p69 = scmp.eq.s32.totalorder %s14, 0
    %p70 = por %p68, %p69
    %p71 = scmp.ne.s32.totalorder %s59, %s60
    %p72 = scmp.eq.s32.totalorder %s15, 1
    %p73 = por %p71, %p72
    %p75 = scmp.ne.s32.totalorder %s60, %s74
    %p76 = scmp.eq.s32.totalorder %s15, 0
    %p77 = por %p75, %p76
    %s78 = sadd.s32 %s16, %s17
    %s79 = sadd.s32 %s28, %s24
    %s80 = ssub.s32 %s78, %s79
    %p81 = scmp.eq.s32.totalorder %s80, 0
    %s83 = sadd.s32 %s82, 1
    %s84 = scalar_select %p81, %s82, %s83
    %p87 = pneg %p81
    %p88 = scmp.eq.s32.totalorder %s9, 1
    %p89 = por %p87, %p88
    %p90 = scmp.ne.s32.totalorder %s82, %s85
    %p91 = scmp.eq.s32.totalorder %s9, 0
    %p92 = por %p90, %p91
    %p93 = scmp.ne.s32.totalorder %s82, %s85
    %p94 = scmp.eq.s32.totalorder %s14, 1
    %p95 = por %p93, %p94
    %p96 = scmp.ne.s32.totalorder %s85, %s86
    %p97 = scmp.eq.s32.totalorder %s14, 0
    %p98 = por %p96, %p97
    %p99 = scmp.ne.s32.totalorder %s85, %s86
    %p100 = scmp.eq.s32.totalorder %s15, 1
    %p101 = por %p99, %p100
    %p103 = scmp.ne.s32.totalorder %s86, %s102
    %p104 = scmp.eq.s32.totalorder %s15, 0
    %p105 = por %p103, %p104
    %s106 = ssub.s32 %s16, %s28
    %p107 = scmp.eq.s32.totalorder %s106, 0
    %s109 = sadd.s32 %s108, 1
    %s110 = scalar_select %p107, %s108, %s109
    %p113 = pneg %p107
    %p114 = scmp.eq.s32.totalorder %s9, 1
    %p115 = por %p113, %p114
    %p116 = scmp.ne.s32.totalorder %s108, %s111
    %p117 = scmp.eq.s32.totalorder %s9, 0
    %p118 = por %p116, %p117
    %p119 = scmp.ne.s32.totalorder %s108, %s111
    %p120 = scmp.eq.s32.totalorder %s14, 1
    %p121 = por %p119, %p120
    %p122 = scmp.ne.s32.totalorder %s111, %s112
    %p123 = scmp.eq.s32.totalorder %s14, 0
    %p124 = por %p122, %p123
    %p125 = scmp.ne.s32.totalorder %s111, %s112
    %p126 = scmp.eq.s32.totalorder %s15, 1
    %p127 = por %p125, %p126
    %p129 = scmp.ne.s32.totalorder %s112, %s128
    %p130 = scmp.eq.s32.totalorder %s15, 0
    %p131 = por %p129, %p130
    %p132 = scmp.le.s32.totalorder 1, %s9
    %p133 = scmp.lt.s32.totalorder %s9, 3
    %p134 = pnand %p132, %p133
    %p135 = pneg %p134
    // Predicated region
    $region9: #{tpu_custom_call.1} parent=5 // pred_check
      _
    $region10: #{tpu_custom_call.1} parent=5 // pred_check_branch
      %137 = sbr.rel (%p134) target = $region12
    $region11: #{tpu_custom_call.1} parent=5 // pred_region
      %s138 = ssub.s32 %s9, 1
      // Predicated region
      $region13: #{tpu_custom_call.1} parent=11 // pred_check
        %p139 = pneg %p70
      $region14: #{tpu_custom_call.1} parent=11 // pred_check_branch
        %141 = sbr.rel (%p139) target = $region16
      $region15: #{tpu_custom_call.1} parent=11 // pred_region
        _
      $region16: #{tpu_custom_call.1} parent=11 // pred_fallthru
        _
    $region12: #{tpu_custom_call.1} parent=5 // pred_fallthru
      _
    %p142 = scmp.lt.s32.totalorder %s9, 2
    // Predicated region
    $region17: #{tpu_custom_call.1} parent=5 // pred_check
      %p143 = pneg %p142
    $region18: #{tpu_custom_call.1} parent=5 // pred_check_branch
      %145 = sbr.rel (%p143) target = $region20
    $region19: #{tpu_custom_call.1} parent=5 // pred_region
      // Predicated region
      $region21: #{tpu_custom_call.1} parent=19 // pred_check
        %p146 = pneg %p43
      $region22: #{tpu_custom_call.1} parent=19 // pred_check_branch
        %148 = sbr.rel (%p146) target = $region24
      $region23: #{tpu_custom_call.1} parent=19 // pred_region
        %s149 = sadd.s32 %s16, %s17
        %s150 = smul.u32 4, %s149
        %p151 = scmp.lt.s32.totalorder %s150, 7
        %s152 = scalar_select %p151, %s150, 7
        %s153 = smul.addr %s152, 8
        %s154 = scalar_lea.vmem %s0, %s153
        %s155 = sadd.s32 %s16, %s17
        %s156 = smul.u32 4, %s155
      $region24: #{tpu_custom_call.1} parent=19 // pred_fallthru
        _
      // Predicated region
      $region25: #{tpu_custom_call.1} parent=19 // pred_check
        %p157 = pneg %p92
      $region26: #{tpu_custom_call.1} parent=19 // pred_check_branch
        %159 = sbr.rel (%p157) target = $region28
      $region27: #{tpu_custom_call.1} parent=19 // pred_region
        %s160 = sadd.s32 %s16, %s17
        %s161 = smul.u32 4, %s160
        %p162 = scmp.lt.s32.totalorder %s161, 7
        %s163 = scalar_select %p162, %s161, 7
        %s164 = smul.addr %s163, 8
        %s165 = scalar_lea.vmem %s2, %s164
        %s166 = sadd.s32 %s16, %s17
        %s167 = smul.u32 4, %s166
      $region28: #{tpu_custom_call.1} parent=19 // pred_fallthru
        _
    $region20: #{tpu_custom_call.1} parent=5 // pred_fallthru
      _
    %p168 = scmp.le.s32.totalorder 1, %s9
    %p169 = scmp.lt.s32.totalorder %s9, 3
    %p170 = pnand %p168, %p169
    %p171 = pneg %p170
    // Predicated region
    $region29: #{tpu_custom_call.1} parent=5 // pred_check
      _
    $region30: #{tpu_custom_call.1} parent=5 // pred_check_branch
      %173 = sbr.rel (%p170) target = $region32
    $region31: #{tpu_custom_call.1} parent=5 // pred_region
      %s174 = ssub.s32 %s9, 1
      %s175 = sadd.s32 %s18, %s19
      %s176 = smul.u32 4, %s175
      %p177 = scmp.lt.s32.totalorder %s176, 7
      %s178 = scalar_select %p177, %s176, 7
      %s179 = smul.addr %s178, 8
      %s180 = scalar_lea.vmem %s0, %s179
      %p181 = pneg %p49
      %p182 = pneg %p46
      %p183 = pneg %p70
      %p184 = pneg %p67
      %s185 = sadd.s32 %s18, %s19
      %s186 = smul.u32 4, %s185
      %p187 = scmp.lt.s32.totalorder %s186, 7
      %s188 = scalar_select %p187, %s186, 7
      %s189 = smul.addr %s188, 8
      %s190 = scalar_lea.vmem %s2, %s189
      %p191 = pneg %p98
      %p192 = pneg %p95
      %p193 = pneg %p124
      %p194 = pneg %p121
      %p195 = scmp.lt.s32.totalorder %s18, 1
      %s196 = scalar_select %p195, %s18, 1
      %s197 = scalar_lea.vmem %s3, %s196
      %s198 = sadd.s32 %s18, %s19
      %s199 = smul.u32 4, %s198
      %p200 = scmp.lt.s32.totalorder %s199, 7
      %s201 = scalar_select %p200, %s199, 7
      %s202 = smul.addr %s201, 8
      %s203 = scalar_lea.vmem %s0, %s202
      %s204 = sadd.s32 %s18, %s19
      %s205 = smul.u32 4, %s204
      %s206 = sadd.s32 %s18, %s19
      %s207 = smul.u32 4, %s206
      %p208 = scmp.lt.s32.totalorder %s207, 7
      %s209 = scalar_select %p208, %s207, 7
      %s210 = smul.addr %s209, 8
      %s211 = scalar_lea.vmem %s2, %s210
      %s212 = sadd.s32 %s18, %s19
      %s213 = smul.u32 4, %s212
      %p214 = scmp.lt.s32.totalorder %s18, 1
      %s215 = scalar_select %p214, %s18, 1
      %s216 = scalar_lea.vmem %s3, %s215
      %p217 = scmp.eq.s32.totalorder %s19, 0
      // Predicated region
      $region33: #{tpu_custom_call.1} parent=31 // pred_check
        %p218 = pneg %p217
      $region34: #{tpu_custom_call.1} parent=31 // pred_check_branch
        %220 = sbr.rel (%p218) target = $region36
      $region35: #{tpu_custom_call.1} parent=31 // pred_region
        %vm221 = vcmask 261120
        %222 = vst.msk [vmem:[#allocation2] sm:$0xff] %vm221, 0.0
      $region36: #{tpu_custom_call.1} parent=31 // pred_fallthru
        _
      %v223 = vld [vmem:[%s211] sm:$0xff]
      %v224 = vld [vmem:[%s203] sm:$0xff]
      %226 = vset.pattern.permute.xlu0 0
      %227 = vperm.xlu0 %226, %v224
      %v228 = vpop.permute.xlu0 %227
      %v230 = vmul.f32 %v223, %v228
      %v231 = vld [vmem:[%s211 + $0x8] sm:$0xff]
      %v232 = vld [vmem:[%s203 + $0x8] sm:$0xff]
      %234 = vset.pattern.permute.xlu0 0
      %235 = vperm.xlu0 %234, %v232
      %v236 = vpop.permute.xlu0 %235
      %v238 = vmul.f32 %v231, %v236
      %v239 = vadd.f32 %v230, %v238
      %v240 = vld [vmem:[%s211 + $0x10] sm:$0xff]
      %v241 = vld [vmem:[%s203 + $0x10] sm:$0xff]
      %243 = vset.pattern.permute.xlu0 0
      %244 = vperm.xlu0 %243, %v241
      %v245 = vpop.permute.xlu0 %244
      %v247 = vmul.f32 %v240, %v245
      %v248 = vadd.f32 %v239, %v247
      %v249 = vld [vmem:[%s211 + $0x18] sm:$0xff]
      %v250 = vld [vmem:[%s203 + $0x18] sm:$0xff]
      %252 = vset.pattern.permute.xlu0 0
      %253 = vperm.xlu0 %252, %v250
      %v254 = vpop.permute.xlu0 %253
      %v256 = vmul.f32 %v249, %v254
      %v257 = vadd.f32 %v248, %v256
      %v258 = vld [vmem:[#allocation2] sm:$0xff]
      %v259 = vadd.f32 %v258, %v257
      %vm260 = vcmask 261120
      %261 = vst.msk [vmem:[#allocation2] sm:$0xff] %vm260, %v259
      // Predicated region
      $region37: #{tpu_custom_call.1} parent=31 // pred_check
        %p262 = pneg %p217
      $region38: #{tpu_custom_call.1} parent=31 // pred_check_branch
        %264 = sbr.rel (%p262) target = $region40
      $region39: #{tpu_custom_call.1} parent=31 // pred_region
        %v265 = vld [vmem:[#allocation2] sm:$0xff]
        %v266 = vld [vmem:[%s1] sm:$0x1]
        %v268 = vlaneseq
        %v269 = vshrl.u32 %v268, 7
        %v270 = vsub.s32 0, %v269
        %v271 = vrot.slane %v266, %v270
        %v273 = vmul.f32 %v265, %v271
        %v274 = vsel %vm260, %v273, 0.0
        %275 = vadd.xlane.f32.xlu0 %v274
        %v276 = vpop.xlane.xlu0 %275
        %v277 = vrot.slane %v276, 4
        %v278 = vadd.f32 %v276, %v277
        %v279 = vrot.slane %v278, 2
        %v280 = vadd.f32 %v278, %v279
        %v281 = vrot.slane %v280, 1
        %v282 = vadd.f32 %v280, %v281
        %s283 = vtos %v282
        %s284 = smul.f32 %s283, 0.5
        %v285 = vstv %s284
        %vm286 = vcmask 0
        %287 = vst.msk [vmem:[%s216] sm:$0x1] %vm286, %v285
      $region40: #{tpu_custom_call.1} parent=31 // pred_fallthru
        _
      %p288 = scmp.lt.s32.totalorder %s18, 1
      %s289 = scalar_select %p288, %s18, 1
      %s290 = scalar_lea.vmem %s3, %s289
      // Predicated region
      $region41: #{tpu_custom_call.1} parent=31 // pred_check
        %p291 = pneg %p121
      $region42: #{tpu_custom_call.1} parent=31 // pred_check_branch
        %293 = sbr.rel (%p291) target = $region44
      $region43: #{tpu_custom_call.1} parent=31 // pred_region
        _
      $region44: #{tpu_custom_call.1} parent=31 // pred_fallthru
        _
    $region32: #{tpu_custom_call.1} parent=5 // pred_fallthru
      _
    %p294 = scmp.le.s32.totalorder 2, %s9
    // Predicated region
    $region45: #{tpu_custom_call.1} parent=5 // pred_check
      %p295 = pneg %p294
    $region46: #{tpu_custom_call.1} parent=5 // pred_check_branch
      %297 = sbr.rel (%p295) target = $region48
    $region47: #{tpu_custom_call.1} parent=5 // pred_region
      %s298 = ssub.s32 %s9, 2
      // Predicated region
      $region49: #{tpu_custom_call.1} parent=47 // pred_check
        %p299 = pneg %p127
      $region50: #{tpu_custom_call.1} parent=47 // pred_check_branch
        %301 = sbr.rel (%p299) target = $region52
      $region51: #{tpu_custom_call.1} parent=47 // pred_region
        %p302 = scmp.lt.s32.totalorder %s20, 1
        %s303 = scalar_select %p302, %s20, 1
        %s304 = scalar_lea.vmem %s3, %s303
      $region52: #{tpu_custom_call.1} parent=47 // pred_fallthru
        _
    $region48: #{tpu_custom_call.1} parent=5 // pred_fallthru
      _
  $region6: #{tpu_custom_call.1} parent=0 // loop_footer
    %s13 = sadd.s32 1, %s9
  $region7: #{tpu_custom_call.1} parent=0 // loop_footer_branch
    %8 = sbr.rel target = $region3
  $region8: #{tpu_custom_call.1} parent=0 // loop_exit
    _

</llo_original>
